<compile_context>
chip_gen: v6e
topology: v6e:2x2x1
jax: 0.10.0
libtpu: 0.0.40
codegen_flags: <defaults>
</compile_context>

<pallas_src>
import jax
import jax.numpy as jnp
from jax.experimental import pallas as pl
from jax.experimental.pallas import tpu as pltpu


def _flat_kernel(d_ref, f_ref, o_ref):
    # d_ref: (T, I) diagonal values; f_ref/o_ref: (T, I*D) lane-dense slabs.
    i_dim = d_ref.shape[1]
    id_dim = f_ref.shape[1]
    d_small = id_dim // i_dim

    # One-hot expansion E[i, j] = 1 iff j // D == i, built without integer
    # division (range compares on an iota).  E entries are exactly 0/1.
    rows = jax.lax.broadcasted_iota(jnp.int32, (i_dim, id_dim), 0)
    cols = jax.lax.broadcasted_iota(jnp.int32, (i_dim, id_dim), 1)
    expand = jnp.logical_and(cols >= rows * d_small,
                             cols < (rows + 1) * d_small)
    e_bf = expand.astype(jnp.bfloat16)                       # (I, I*D)

    # Exact f32 lane-broadcast of diag via MXU: split diag into three bf16
    # parts (hi + mid + lo == diag exactly); each bf16 x {0,1} product and the
    # explicit f32 summation order below are exact, so dexp[t, j] == diag[t, j//D].
    d32 = d_ref[...].astype(jnp.float32)
    hi = d32.astype(jnp.bfloat16)
    r1 = d32 - hi.astype(jnp.float32)
    mid = r1.astype(jnp.bfloat16)
    lo = (r1 - mid.astype(jnp.float32)).astype(jnp.bfloat16)

    dexp = jnp.dot(hi, e_bf, preferred_element_type=jnp.float32)
    dexp = dexp + jnp.dot(mid, e_bf, preferred_element_type=jnp.float32)
    dexp = dexp + jnp.dot(lo, e_bf, preferred_element_type=jnp.float32)

    o_ref[...] = (dexp * f_ref[...].astype(jnp.float32)).astype(o_ref.dtype)


def _bcast_kernel(d_ref, f_ref, o_ref):
    # d_ref: (T, I, 1); f_ref/o_ref: (T, I, D) with D already lane-dense.
    o_ref[...] = (d_ref[...] * f_ref[...]).astype(o_ref.dtype)


def _pick_rows(total_rows, row_bytes, target_bytes, need_mult8):
    """Largest row-chunk whose block fits target_bytes, divides the array, and
    (if required) keeps the sublane dim a multiple of 8 or the full extent."""
    cap = max(1, min(total_rows, target_bytes // max(row_bytes, 1)))
    for t in range(cap, 0, -1):
        if total_rows % t:
            continue
        if need_mult8 and t != total_rows and t % 8:
            continue
        return t
    return None


def mean_aggregator(features: jax.Array, A: jax.Array,
                    *, target_block_bytes: int = 1 << 20) -> jax.Array:
    """out[b,n,i,d] = A[b,n,i,i] * features[b,n,i,d]."""
    B, N, I, D = features.shape
    assert A.shape == (B, N, I, I)
    BN = B * N
    out_dtype = jnp.result_type(features.dtype, A.dtype)
    itemsize = features.dtype.itemsize

    # Only the diagonal of A is needed — extract it outside the kernel so the
    # kernel never touches the (I, I) blocks.
    diag = jnp.einsum('bnii->bni', A)                        # (B, N, I)

    compiler_params = pltpu.CompilerParams(
        dimension_semantics=("parallel",),                   # v7x: 2 TCs split it
        vmem_limit_bytes=32 * 1024 * 1024)

    # Lane-dense path: flatten (I, D) -> I*D last dim.  Used when D is not
    # already a multiple of 128 and the one-hot expansion matrix stays small.
    use_flat = (D % 128 != 0) and (I * I * D * 4 <= (1 << 20))
    if use_flat:
        t = _pick_rows(BN, I * D * itemsize, target_block_bytes, need_mult8=True)
        if t is not None:
            f2 = features.reshape(BN, I * D)
            d2 = diag.reshape(BN, I)
            out = pl.pallas_call(
                _flat_kernel,
                out_shape=jax.ShapeDtypeStruct((BN, I * D), out_dtype),
                grid_spec=pltpu.PrefetchScalarGridSpec(
                    num_scalar_prefetch=0,
                    grid=(BN // t,),
                    in_specs=[pl.BlockSpec((t, I), lambda g: (g, 0)),
                              pl.BlockSpec((t, I * D), lambda g: (g, 0))],
                    out_specs=pl.BlockSpec((t, I * D), lambda g: (g, 0)),
                ),
                compiler_params=compiler_params,
            )(d2, f2)
            return out.reshape(B, N, I, D)

    # Fallback path: keep (I, D) as the last two dims (full-extent blocks, so
    # no (8, 128) divisibility constraint).  Used when D % 128 == 0 (already
    # lane-dense) or when I*I*D is too large for the expansion trick.
    # Budget includes the lane-padded (I, 1) diag block (~I*128 elems / row).
    row_bytes = (I * D + I * 128) * itemsize
    t = _pick_rows(BN, row_bytes, target_block_bytes, need_mult8=False)
    f3 = features.reshape(BN, I, D)
    d3 = diag.reshape(BN, I, 1)
    out = pl.pallas_call(
        _bcast_kernel,
        out_shape=jax.ShapeDtypeStruct((BN, I, D), out_dtype),
        grid_spec=pltpu.PrefetchScalarGridSpec(
            num_scalar_prefetch=0,
            grid=(BN // t,),
            in_specs=[pl.BlockSpec((t, I, 1), lambda g: (g, 0, 0)),
                      pl.BlockSpec((t, I, D), lambda g: (g, 0, 0))],
            out_specs=pl.BlockSpec((t, I, D), lambda g: (g, 0, 0)),
        ),
        compiler_params=compiler_params,
    )(d3, f3)
    return out.reshape(B, N, I, D)


if __name__ == "__main__":
    # Primary shape (exercises the lane-dense flattened path).
    B, N, I, D = 2, 4, 16, 32
    key = jax.random.PRNGKey(0)
    k_f, k_a, k_f2, k_a2 = jax.random.split(key, 4)
    features = jax.random.normal(k_f, (B, N, I, D), dtype=jnp.float32)
    A = jax.random.normal(k_a, (B, N, I, I), dtype=jnp.float32)

    out = jax.block_until_ready(mean_aggregator(features, A))
    ref = jnp.einsum('bnii,bnid->bnid', A, features)
    assert out.shape == ref.shape
    assert jnp.allclose(out, ref, atol=1e-5, rtol=1e-5)

    # Secondary shape with D % 128 == 0 (exercises the 3-D broadcast path).
    f2 = jax.random.normal(k_f2, (1, 2, 8, 128), dtype=jnp.float32)
    A2 = jax.random.normal(k_a2, (1, 2, 8, 8), dtype=jnp.float32)
    out2 = jax.block_until_ready(mean_aggregator(f2, A2))
    ref2 = jnp.einsum('bnii,bnid->bnid', A2, f2)
    assert jnp.allclose(out2, ref2, atol=1e-5, rtol=1e-5)

    print("KERNEL_OK")
</pallas_src>

<mosaic_0001>
module attributes {stable_mosaic.version = 11 : i64} {
  func.func @_flat_kernel(%arg0: i32, %arg1: memref<8x16xf32, #tpu.memory_space<vmem>>, %arg2: memref<8x512xf32, #tpu.memory_space<vmem>>, %arg3: memref<8x512xf32, #tpu.memory_space<vmem>>) attributes {dimension_semantics = [#tpu.dimension_semantics<parallel>], iteration_bounds = array<i64: 1>, scalar_prefetch = 0 : i64, scratch_operands = 0 : i64, tpu.core_type = #tpu.core_type<tc>, window_params = [{transform_indices = @transform_0, window_bounds = array<i64: 8, 16>}, {transform_indices = @transform_1, window_bounds = array<i64: 8, 512>}, {transform_indices = @transform_2, window_bounds = array<i64: 8, 512>}]} {
    %0 = tpu.iota {dimensions = array<i32: 0>} : vector<16x512xi32>
    %1 = tpu.iota {dimensions = array<i32: 1>} : vector<16x512xi32>
    %c32_i32 = arith.constant 32 : i32
    %2 = vector.broadcast %c32_i32 : i32 to vector<16x512xi32>
    %3 = arith.muli %0, %2 : vector<16x512xi32>
    %4 = arith.cmpi sge, %1, %3 : vector<16x512xi32>
    %c1_i32 = arith.constant 1 : i32
    %5 = vector.broadcast %c1_i32 : i32 to vector<16x512xi32>
    %6 = arith.addi %0, %5 : vector<16x512xi32>
    %c32_i32_0 = arith.constant 32 : i32
    %7 = vector.broadcast %c32_i32_0 : i32 to vector<16x512xi32>
    %8 = arith.muli %6, %7 : vector<16x512xi32>
    %9 = arith.cmpi slt, %1, %8 : vector<16x512xi32>
    %10 = arith.andi %4, %9 : vector<16x512xi1>
    %11 = arith.extui %10 : vector<16x512xi1> to vector<16x512xi32>
    %12 = arith.sitofp %11 : vector<16x512xi32> to vector<16x512xf32>
    %13 = arith.truncf %12 : vector<16x512xf32> to vector<16x512xbf16>
    %c0 = arith.constant 0 : index
    %c0_1 = arith.constant 0 : index
    %14 = vector.load %arg1[%c0, %c0_1] : memref<8x16xf32, #tpu.memory_space<vmem>>, vector<8x16xf32>
    %15 = arith.truncf %14 : vector<8x16xf32> to vector<8x16xbf16>
    %16 = arith.extf %15 : vector<8x16xbf16> to vector<8x16xf32>
    %17 = arith.subf %14, %16 : vector<8x16xf32>
    %18 = arith.truncf %17 : vector<8x16xf32> to vector<8x16xbf16>
    %19 = arith.extf %18 : vector<8x16xbf16> to vector<8x16xf32>
    %20 = arith.subf %17, %19 : vector<8x16xf32>
    %21 = arith.truncf %20 : vector<8x16xf32> to vector<8x16xbf16>
    %cst = arith.constant dense<0.000000e+00> : vector<8x512xf32>
    %22 = tpu.matmul %15, %13, %cst {dimension_numbers = #tpu.dot_dimension_numbers<[1], [0], [0], [1], [0, 0, 1, 1], [], []>} : vector<8x16xbf16>, vector<16x512xbf16>, vector<8x512xf32> -> vector<8x512xf32>
    %cst_2 = arith.constant dense<0.000000e+00> : vector<8x512xf32>
    %23 = tpu.matmul %18, %13, %cst_2 {dimension_numbers = #tpu.dot_dimension_numbers<[1], [0], [0], [1], [0, 0, 1, 1], [], []>} : vector<8x16xbf16>, vector<16x512xbf16>, vector<8x512xf32> -> vector<8x512xf32>
    %24 = arith.addf %22, %23 : vector<8x512xf32>
    %cst_3 = arith.constant dense<0.000000e+00> : vector<8x512xf32>
    %25 = tpu.matmul %21, %13, %cst_3 {dimension_numbers = #tpu.dot_dimension_numbers<[1], [0], [0], [1], [0, 0, 1, 1], [], []>} : vector<8x16xbf16>, vector<16x512xbf16>, vector<8x512xf32> -> vector<8x512xf32>
    %26 = arith.addf %24, %25 : vector<8x512xf32>
    %c0_4 = arith.constant 0 : index
    %c0_5 = arith.constant 0 : index
    %27 = vector.load %arg2[%c0_4, %c0_5] : memref<8x512xf32, #tpu.memory_space<vmem>>, vector<8x512xf32>
    %28 = arith.mulf %26, %27 : vector<8x512xf32>
    %c0_6 = arith.constant 0 : index
    %c0_7 = arith.constant 0 : index
    %29 = vector.load %arg3[%c0_6, %c0_7] : memref<8x512xf32, #tpu.memory_space<vmem>>, vector<8x512xf32>
    tpu.vector_store %arg3[%c0_6, %c0_7], %28 {strides = array<i32>} : memref<8x512xf32, #tpu.memory_space<vmem>>, vector<8x512xf32>,
    return
  }
  func.func @transform_0(%arg0: i32) -> (i32, i32) {
    %c0_i32 = arith.constant 0 : i32
    %c0_i32_0 = arith.constant 0 : i32
    return %arg0, %c0_i32 : i32, i32
  }
  func.func @transform_1(%arg0: i32) -> (i32, i32) {
    %c0_i32 = arith.constant 0 : i32
    %c0_i32_0 = arith.constant 0 : i32
    return %arg0, %c0_i32 : i32, i32
  }
  func.func @transform_2(%arg0: i32) -> (i32, i32) {
    %c0_i32 = arith.constant 0 : i32
    %c0_i32_0 = arith.constant 0 : i32
    return %arg0, %c0_i32 : i32, i32
  }
}

</mosaic_0001>

<llo_original>
// kernel: tpu_custom_call.1
$region0: #{tpu_custom_call.1}
  #allocation0 [shape = 'u32[]', space=smem, size = 0x4, offset = 0x4, fixed_abs, tag = 'smem constant byte address 0x4 - core index']
  #allocation1 [shape = 'u32[144,128]{1,0:T(1,128)}', space=vmem, size = 0x12000, scoped, tag = 'internal scratch']
  %s0 = inlined_call_operand.hbm [shape: f32[8,16], index: 0, kind: input, shape index: {}]
  %s1 = inlined_call_operand.hbm [shape: f32[8,512], index: 1, kind: input, shape index: {}]
  %s2 = inlined_call_operand.hbm [shape: f32[8,512], index: 2, kind: output, shape index: {}]
  %s3 = sld [smem:[#allocation0]]
  $region26: #{tpu_custom_call.1} parent=0
    _
  %s5 = ssub.s32 1, %s3
  %s6 = scalar_select 0, %s5, %s3
  $region1: #{tpu_custom_call.1} parent=0
    #allocation2 [shape = 'u8[4096]{0}', space=vmem, size = 0x1000, scoped, tag = 'input window, operand 0, single buffered']
    #allocation3 [shape = 's32[1]{0}', space=sflag, size = 0x4, scoped, tag = 'scoped memory for tpu_custom_call.1']
    #allocation4 [shape = 's32[1]{0}', space=sflag, size = 0x4, scoped, tag = 'scoped memory for tpu_custom_call.1']
    #allocation5 [shape = 'u8[16384]{0}', space=vmem, size = 0x4000, scoped, tag = 'input window, operand 1, single buffered']
    #allocation6 [shape = 's32[1]{0}', space=sflag, size = 0x4, scoped, tag = 'scoped memory for tpu_custom_call.1']
    #allocation7 [shape = 'u8[16384]{0}', space=vmem, size = 0x4000, scoped, tag = 'output window, operand 0, single buffered']
    %7 = vsyncpa [#allocation3], 0
    %8 = vsyncpa [#allocation6], 0
    %9 = vsyncpa [#allocation4], 0
    // Predicated region
    $region2: #{tpu_custom_call.1} parent=1 // pred_check
      _
    $region3: #{tpu_custom_call.1} parent=1 // pred_check_branch
      %11 = sbr.rel (0) target = $region5
    $region4: #{tpu_custom_call.1} parent=1 // pred_region
      %s13 = ssub.s32 128, 128
      %14 = vsyncadd [#allocation3], %s13
      %s16 = sshll.u32 [#allocation2], 4
      %s17 = int_to_ptr.vmem [resolvable:$true] %s16
      %19 = dma.hbm_to_vmem [thread:$0]  %s0, 128, %s17, [#allocation3]
    $region5: #{tpu_custom_call.1} parent=1 // pred_fallthru
      _
    // Predicated region
    $region6: #{tpu_custom_call.1} parent=1 // pred_check
      _
    $region7: #{tpu_custom_call.1} parent=1 // pred_check_branch
      %21 = sbr.rel (0) target = $region9
    $region8: #{tpu_custom_call.1} parent=1 // pred_region
      %s23 = ssub.s32 512, 512
      %24 = vsyncadd [#allocation6], %s23
      %s26 = sshll.u32 [#allocation5], 4
      %s27 = int_to_ptr.vmem [resolvable:$true] %s26
      %29 = dma.hbm_to_vmem [thread:$0]  %s1, 512, %s27, [#allocation6]
    $region9: #{tpu_custom_call.1} parent=1 // pred_fallthru
      _
    // Predicated region
    $region10: #{tpu_custom_call.1} parent=1 // pred_check
      _
    $region11: #{tpu_custom_call.1} parent=1 // pred_check_branch
      %31 = sbr.rel (0) target = $region13
    $region12: #{tpu_custom_call.1} parent=1 // pred_region
      %32 = dma.done [#allocation3], 128
    $region13: #{tpu_custom_call.1} parent=1 // pred_fallthru
      _
    // Predicated region
    $region14: #{tpu_custom_call.1} parent=1 // pred_check
      _
    $region15: #{tpu_custom_call.1} parent=1 // pred_check_branch
      %34 = sbr.rel (0) target = $region17
    $region16: #{tpu_custom_call.1} parent=1 // pred_region
      %35 = dma.done [#allocation6], 512
    $region17: #{tpu_custom_call.1} parent=1 // pred_fallthru
      _
    %v37 = vlaneseq
    %v38 = vshrl.u32 %v37, 7
    %v39 = vadd.s32 %v38, 8
    %v40 = vlaneseq
    %v41 = vand.u32 %v40, 127
    %v42 = vadd.s32 %v41, 128
    %v43 = vadd.s32 %v41, 256
    %v44 = vadd.s32 %v41, 384
    %v45 = vmul.u32 %v38, 32
    %v46 = vmul.u32 %v39, 32
    %vm47 = vcmp.ge.s32.totalorder %v41, %v45
    %vm48 = vcmp.ge.s32.totalorder %v42, %v45
    %vm49 = vcmp.ge.s32.totalorder %v43, %v45
    %vm50 = vcmp.ge.s32.totalorder %v44, %v45
    %vm51 = vcmp.ge.s32.totalorder %v41, %v46
    %vm52 = vcmp.ge.s32.totalorder %v42, %v46
    %vm53 = vcmp.ge.s32.totalorder %v43, %v46
    %vm54 = vcmp.ge.s32.totalorder %v44, %v46
    %v55 = vadd.s32 %v38, 1
    %v56 = vadd.s32 %v39, 1
    %v57 = vmul.u32 %v55, 32
    %v58 = vmul.u32 %v56, 32
    %vm59 = vcmp.lt.s32.totalorder %v41, %v57
    %vm60 = vcmp.lt.s32.totalorder %v42, %v57
    %vm61 = vcmp.lt.s32.totalorder %v43, %v57
    %vm62 = vcmp.lt.s32.totalorder %v44, %v57
    %vm63 = vcmp.lt.s32.totalorder %v41, %v58
    %vm64 = vcmp.lt.s32.totalorder %v42, %v58
    %vm65 = vcmp.lt.s32.totalorder %v43, %v58
    %vm66 = vcmp.lt.s32.totalorder %v44, %v58
    %vm67 = vmand %vm47, %vm59
    %vm68 = vmand %vm48, %vm60
    %vm69 = vmand %vm49, %vm61
    %vm70 = vmand %vm50, %vm62
    %vm71 = vmand %vm51, %vm63
    %vm72 = vmand %vm52, %vm64
    %vm73 = vmand %vm53, %vm65
    %vm74 = vmand %vm54, %vm66
    %v75 = vsel %vm67, 1, 0
    %v76 = vsel %vm68, 1, 0
    %v77 = vsel %vm69, 1, 0
    %v78 = vsel %vm70, 1, 0
    %v79 = vsel %vm71, 1, 0
    %v80 = vsel %vm72, 1, 0
    %v81 = vsel %vm73, 1, 0
    %v82 = vsel %vm74, 1, 0
    %v83 = vcvt.s32.f32 %v75
    %v84 = vcvt.s32.f32 %v76
    %v85 = vcvt.s32.f32 %v77
    %v86 = vcvt.s32.f32 %v78
    %v87 = vcvt.s32.f32 %v79
    %v88 = vcvt.s32.f32 %v80
    %v89 = vcvt.s32.f32 %v81
    %v90 = vcvt.s32.f32 %v82
    %v91 = vpack.c.bf16 %v87, %v83
    %v92 = vpack.c.bf16 %v88, %v84
    %v93 = vpack.c.bf16 %v89, %v85
    %v94 = vpack.c.bf16 %v90, %v86
    %v95 = vld [vmem:[#allocation2] sm:$0xff]
    %v96 = vpack.c.bf16 %v95, %v95
    %v97 = vunpack.c.l.bf16 %v96
    %v98 = vsub.f32 %v95, %v97
    %v99 = vpack.c.bf16 %v98, %v98
    %v100 = vunpack.c.l.bf16 %v99
    %v101 = vsub.f32 %v98, %v100
    %v102 = vpack.c.bf16 %v101, %v101
    %vm103 = vcmask 130048
    %v105 = vsel %vm103, %v99, 0
    %107 = vmatprep.subr.bf16.mxu0 0
    %108 = vmatpush1.bf16.msra.mxu0 0
    %109 = vmatprep.subr.bf16.mxu0 0
    %110 = vmatpush1.bf16.msra.mxu0 0
    %111 = vmatprep.subr.bf16.mxu0 0
    %112 = vmatpush1.bf16.msra.mxu0 0
    %113 = vmatprep.subr.bf16.mxu0 0
    %114 = vmatpush1.bf16.msra.mxu0 0
    %115 = vmatprep.subr.bf16.mxu0 0
    %116 = vmatpush1.bf16.msra.mxu0 0
    %117 = vmatprep.subr.bf16.mxu0 0
    %118 = vmatpush1.bf16.msra.mxu0 0
    %119 = vmatprep.subr.bf16.mxu0 0
    %120 = vmatpush1.bf16.msra.mxu0 0
    %121 = vmatprep.subr.bf16.mxu0 %v92
    %122 = vmatpush1.bf16.msra.mxu0 %v91
    %123 = vmatprep.subr.bf16.mxu0 0
    %124 = vmatpush2.bf16.msra.mxu0 0
    %125 = vmatprep.subr.bf16.mxu0 0
    %126 = vmatpush2.bf16.msra.mxu0 0
    %127 = vmatprep.subr.bf16.mxu0 0
    %128 = vmatpush2.bf16.msra.mxu0 0
    %129 = vmatprep.subr.bf16.mxu0 0
    %130 = vmatpush2.bf16.msra.mxu0 0
    %131 = vmatprep.subr.bf16.mxu0 0
    %132 = vmatpush2.bf16.msra.mxu0 0
    %133 = vmatprep.subr.bf16.mxu0 0
    %134 = vmatpush2.bf16.msra.mxu0 0
    %135 = vmatprep.subr.bf16.mxu0 0
    %136 = vmatpush2.bf16.msra.mxu0 0
    %137 = vmatprep.subr.bf16.mxu0 0
    %138 = vmatpush2.bf16.msra.mxu0 0
    %139 = vmatprep.mubr.bf16.mxu0 0
    %140 = vmatmul.mubr.bf16.gmra.mxu0 %v105
    %v141 = vpop.f32.mrf.mxu0
    %v142 = vadd.f32 0.0, %v141
    %v143 = vpop.f32.mrf.mxu0
    %v144 = vadd.f32 0.0, %v143
    %v145 = vpop.f32.mrf.mxu0
    %v146 = vpop.f32.mrf.mxu0
    %147 = vdwg.mxu0
    %148 = vmatprep.subr.bf16.mxu0 0
    %149 = vmatpush1.bf16.msra.mxu0 0
    %150 = vmatprep.subr.bf16.mxu0 0
    %151 = vmatpush1.bf16.msra.mxu0 0
    %152 = vmatprep.subr.bf16.mxu0 0
    %153 = vmatpush1.bf16.msra.mxu0 0
    %154 = vmatprep.subr.bf16.mxu0 0
    %155 = vmatpush1.bf16.msra.mxu0 0
    %156 = vmatprep.subr.bf16.mxu0 0
    %157 = vmatpush1.bf16.msra.mxu0 0
    %158 = vmatprep.subr.bf16.mxu0 0
    %159 = vmatpush1.bf16.msra.mxu0 0
    %160 = vmatprep.subr.bf16.mxu0 0
    %161 = vmatpush1.bf16.msra.mxu0 0
    %162 = vmatprep.subr.bf16.mxu0 %v94
    %163 = vmatpush1.bf16.msra.mxu0 %v93
    %164 = vmatprep.subr.bf16.mxu0 0
    %165 = vmatpush2.bf16.msra.mxu0 0
    %166 = vmatprep.subr.bf16.mxu0 0
    %167 = vmatpush2.bf16.msra.mxu0 0
    %168 = vmatprep.subr.bf16.mxu0 0
    %169 = vmatpush2.bf16.msra.mxu0 0
    %170 = vmatprep.subr.bf16.mxu0 0
    %171 = vmatpush2.bf16.msra.mxu0 0
    %172 = vmatprep.subr.bf16.mxu0 0
    %173 = vmatpush2.bf16.msra.mxu0 0
    %174 = vmatprep.subr.bf16.mxu0 0
    %175 = vmatpush2.bf16.msra.mxu0 0
    %176 = vmatprep.subr.bf16.mxu0 0
    %177 = vmatpush2.bf16.msra.mxu0 0
    %178 = vmatprep.subr.bf16.mxu0 0
    %179 = vmatpush2.bf16.msra.mxu0 0
    %180 = vmatprep.mubr.bf16.mxu0 0
    %181 = vmatmul.mubr.bf16.gmra.mxu0 %v105
    %v182 = vpop.f32.mrf.mxu0
    %v183 = vadd.f32 0.0, %v182
    %v184 = vpop.f32.mrf.mxu0
    %v185 = vadd.f32 0.0, %v184
    %v186 = vpop.f32.mrf.mxu0
    %v187 = vpop.f32.mrf.mxu0
    %188 = vdwg.mxu0
    %v190 = vsel %vm103, %v96, 0
    %192 = vmatprep.subr.bf16.mxu0 0
    %193 = vmatpush1.bf16.msra.mxu0 0
    %194 = vmatprep.subr.bf16.mxu0 0
    %195 = vmatpush1.bf16.msra.mxu0 0
    %196 = vmatprep.subr.bf16.mxu0 0
    %197 = vmatpush1.bf16.msra.mxu0 0
    %198 = vmatprep.subr.bf16.mxu0 0
    %199 = vmatpush1.bf16.msra.mxu0 0
    %200 = vmatprep.subr.bf16.mxu0 0
    %201 = vmatpush1.bf16.msra.mxu0 0
    %202 = vmatprep.subr.bf16.mxu0 0
    %203 = vmatpush1.bf16.msra.mxu0 0
    %204 = vmatprep.subr.bf16.mxu0 0
    %205 = vmatpush1.bf16.msra.mxu0 0
    %206 = vmatprep.subr.bf16.mxu0 %v92
    %207 = vmatpush1.bf16.msra.mxu0 %v91
    %208 = vmatprep.subr.bf16.mxu0 0
    %209 = vmatpush2.bf16.msra.mxu0 0
    %210 = vmatprep.subr.bf16.mxu0 0
    %211 = vmatpush2.bf16.msra.mxu0 0
    %212 = vmatprep.subr.bf16.mxu0 0
    %213 = vmatpush2.bf16.msra.mxu0 0
    %214 = vmatprep.subr.bf16.mxu0 0
    %215 = vmatpush2.bf16.msra.mxu0 0
    %216 = vmatprep.subr.bf16.mxu0 0
    %217 = vmatpush2.bf16.msra.mxu0 0
    %218 = vmatprep.subr.bf16.mxu0 0
    %219 = vmatpush2.bf16.msra.mxu0 0
    %220 = vmatprep.subr.bf16.mxu0 0
    %221 = vmatpush2.bf16.msra.mxu0 0
    %222 = vmatprep.subr.bf16.mxu0 0
    %223 = vmatpush2.bf16.msra.mxu0 0
    %224 = vmatprep.mubr.bf16.mxu0 0
    %225 = vmatmul.mubr.bf16.gmra.mxu0 %v190
    %v226 = vpop.f32.mrf.mxu0
    %v227 = vadd.f32 %v142, %v226
    %v228 = vpop.f32.mrf.mxu0
    %v229 = vadd.f32 %v144, %v228
    %v230 = vpop.f32.mrf.mxu0
    %v231 = vpop.f32.mrf.mxu0
    %232 = vdwg.mxu0
    %233 = vmatprep.subr.bf16.mxu0 0
    %234 = vmatpush1.bf16.msra.mxu0 0
    %235 = vmatprep.subr.bf16.mxu0 0
    %236 = vmatpush1.bf16.msra.mxu0 0
    %237 = vmatprep.subr.bf16.mxu0 0
    %238 = vmatpush1.bf16.msra.mxu0 0
    %239 = vmatprep.subr.bf16.mxu0 0
    %240 = vmatpush1.bf16.msra.mxu0 0
    %241 = vmatprep.subr.bf16.mxu0 0
    %242 = vmatpush1.bf16.msra.mxu0 0
    %243 = vmatprep.subr.bf16.mxu0 0
    %244 = vmatpush1.bf16.msra.mxu0 0
    %245 = vmatprep.subr.bf16.mxu0 0
    %246 = vmatpush1.bf16.msra.mxu0 0
    %247 = vmatprep.subr.bf16.mxu0 %v94
    %248 = vmatpush1.bf16.msra.mxu0 %v93
    %249 = vmatprep.subr.bf16.mxu0 0
    %250 = vmatpush2.bf16.msra.mxu0 0
    %251 = vmatprep.subr.bf16.mxu0 0
    %252 = vmatpush2.bf16.msra.mxu0 0
    %253 = vmatprep.subr.bf16.mxu0 0
    %254 = vmatpush2.bf16.msra.mxu0 0
    %255 = vmatprep.subr.bf16.mxu0 0
    %256 = vmatpush2.bf16.msra.mxu0 0
    %257 = vmatprep.subr.bf16.mxu0 0
    %258 = vmatpush2.bf16.msra.mxu0 0
    %259 = vmatprep.subr.bf16.mxu0 0
    %260 = vmatpush2.bf16.msra.mxu0 0
    %261 = vmatprep.subr.bf16.mxu0 0
    %262 = vmatpush2.bf16.msra.mxu0 0
    %263 = vmatprep.subr.bf16.mxu0 0
    %264 = vmatpush2.bf16.msra.mxu0 0
    %265 = vmatprep.mubr.bf16.mxu0 0
    %266 = vmatmul.mubr.bf16.gmra.mxu0 %v190
    %v267 = vpop.f32.mrf.mxu0
    %v268 = vadd.f32 %v183, %v267
    %v269 = vpop.f32.mrf.mxu0
    %v270 = vadd.f32 %v185, %v269
    %v271 = vpop.f32.mrf.mxu0
    %v272 = vpop.f32.mrf.mxu0
    %273 = vdwg.mxu0
    %v275 = vsel %vm103, %v102, 0
    %277 = vmatprep.subr.bf16.mxu0 0
    %278 = vmatpush1.bf16.msra.mxu0 0
    %279 = vmatprep.subr.bf16.mxu0 0
    %280 = vmatpush1.bf16.msra.mxu0 0
    %281 = vmatprep.subr.bf16.mxu0 0
    %282 = vmatpush1.bf16.msra.mxu0 0
    %283 = vmatprep.subr.bf16.mxu0 0
    %284 = vmatpush1.bf16.msra.mxu0 0
    %285 = vmatprep.subr.bf16.mxu0 0
    %286 = vmatpush1.bf16.msra.mxu0 0
    %287 = vmatprep.subr.bf16.mxu0 0
    %288 = vmatpush1.bf16.msra.mxu0 0
    %289 = vmatprep.subr.bf16.mxu0 0
    %290 = vmatpush1.bf16.msra.mxu0 0
    %291 = vmatprep.subr.bf16.mxu0 %v92
    %292 = vmatpush1.bf16.msra.mxu0 %v91
    %293 = vmatprep.subr.bf16.mxu0 0
    %294 = vmatpush2.bf16.msra.mxu0 0
    %295 = vmatprep.subr.bf16.mxu0 0
    %296 = vmatpush2.bf16.msra.mxu0 0
    %297 = vmatprep.subr.bf16.mxu0 0
    %298 = vmatpush2.bf16.msra.mxu0 0
    %299 = vmatprep.subr.bf16.mxu0 0
    %300 = vmatpush2.bf16.msra.mxu0 0
    %301 = vmatprep.subr.bf16.mxu0 0
    %302 = vmatpush2.bf16.msra.mxu0 0
    %303 = vmatprep.subr.bf16.mxu0 0
    %304 = vmatpush2.bf16.msra.mxu0 0
    %305 = vmatprep.subr.bf16.mxu0 0
    %306 = vmatpush2.bf16.msra.mxu0 0
    %307 = vmatprep.subr.bf16.mxu0 0
    %308 = vmatpush2.bf16.msra.mxu0 0
    %309 = vmatprep.mubr.bf16.mxu0 0
    %310 = vmatmul.mubr.bf16.gmra.mxu0 %v275
    %v311 = vpop.f32.mrf.mxu0
    %v312 = vadd.f32 0.0, %v311
    %v313 = vpop.f32.mrf.mxu0
    %v314 = vadd.f32 0.0, %v313
    %v315 = vpop.f32.mrf.mxu0
    %v316 = vpop.f32.mrf.mxu0
    %317 = vdwg.mxu0
    %318 = vmatprep.subr.bf16.mxu0 0
    %319 = vmatpush1.bf16.msra.mxu0 0
    %320 = vmatprep.subr.bf16.mxu0 0
    %321 = vmatpush1.bf16.msra.mxu0 0
    %322 = vmatprep.subr.bf16.mxu0 0
    %323 = vmatpush1.bf16.msra.mxu0 0
    %324 = vmatprep.subr.bf16.mxu0 0
    %325 = vmatpush1.bf16.msra.mxu0 0
    %326 = vmatprep.subr.bf16.mxu0 0
    %327 = vmatpush1.bf16.msra.mxu0 0
    %328 = vmatprep.subr.bf16.mxu0 0
    %329 = vmatpush1.bf16.msra.mxu0 0
    %330 = vmatprep.subr.bf16.mxu0 0
    %331 = vmatpush1.bf16.msra.mxu0 0
    %332 = vmatprep.subr.bf16.mxu0 %v94
    %333 = vmatpush1.bf16.msra.mxu0 %v93
    %334 = vmatprep.subr.bf16.mxu0 0
    %335 = vmatpush2.bf16.msra.mxu0 0
    %336 = vmatprep.subr.bf16.mxu0 0
    %337 = vmatpush2.bf16.msra.mxu0 0
    %338 = vmatprep.subr.bf16.mxu0 0
    %339 = vmatpush2.bf16.msra.mxu0 0
    %340 = vmatprep.subr.bf16.mxu0 0
    %341 = vmatpush2.bf16.msra.mxu0 0
    %342 = vmatprep.subr.bf16.mxu0 0
    %343 = vmatpush2.bf16.msra.mxu0 0
    %344 = vmatprep.subr.bf16.mxu0 0
    %345 = vmatpush2.bf16.msra.mxu0 0
    %346 = vmatprep.subr.bf16.mxu0 0
    %347 = vmatpush2.bf16.msra.mxu0 0
    %348 = vmatprep.subr.bf16.mxu0 0
    %349 = vmatpush2.bf16.msra.mxu0 0
    %350 = vmatprep.mubr.bf16.mxu0 0
    %351 = vmatmul.mubr.bf16.gmra.mxu0 %v275
    %v352 = vpop.f32.mrf.mxu0
    %v353 = vadd.f32 0.0, %v352
    %v354 = vpop.f32.mrf.mxu0
    %v355 = vadd.f32 0.0, %v354
    %v356 = vpop.f32.mrf.mxu0
    %v357 = vpop.f32.mrf.mxu0
    %358 = vdwg.mxu0
    %v359 = vadd.f32 %v227, %v312
    %v360 = vadd.f32 %v229, %v314
    %v361 = vadd.f32 %v268, %v353
    %v362 = vadd.f32 %v270, %v355
    %v363 = vld [vmem:[#allocation5] sm:$0xff]
    %v364 = vld [vmem:[#allocation5 + $0x8] sm:$0xff]
    %v365 = vld [vmem:[#allocation5 + $0x10] sm:$0xff]
    %v366 = vld [vmem:[#allocation5 + $0x18] sm:$0xff]
    %v367 = vmul.f32 %v359, %v363
    %v368 = vmul.f32 %v360, %v364
    %v369 = vmul.f32 %v361, %v365
    %v370 = vmul.f32 %v362, %v366
    %371 = vst [vmem:[#allocation7] sm:$0xff] %v367
    %372 = vst [vmem:[#allocation7 + $0x8] sm:$0xff] %v368
    %373 = vst [vmem:[#allocation7 + $0x10] sm:$0xff] %v369
    %374 = vst [vmem:[#allocation7 + $0x18] sm:$0xff] %v370
    // Predicated region
    $region18: #{tpu_custom_call.1} parent=1 // pred_check
      _
    $region19: #{tpu_custom_call.1} parent=1 // pred_check_branch
      %376 = sbr.rel (0) target = $region21
    $region20: #{tpu_custom_call.1} parent=1 // pred_region
      %s378 = ssub.s32 512, 512
      %379 = vsyncadd [#allocation4], %s378
      %s381 = sshll.u32 [#allocation7], 4
      %s382 = int_to_ptr.vmem [resolvable:$true] %s381
      %384 = dma.vmem_to_hbm [thread:$0]  %s382, 512, %s2, [#allocation4]
    $region21: #{tpu_custom_call.1} parent=1 // pred_fallthru
      _
    // Predicated region
    $region22: #{tpu_custom_call.1} parent=1 // pred_check
      _
    $region23: #{tpu_custom_call.1} parent=1 // pred_check_branch
      %386 = sbr.rel (0) target = $region25
    $region24: #{tpu_custom_call.1} parent=1 // pred_region
      %387 = dma.done [#allocation4], 512
    $region25: #{tpu_custom_call.1} parent=1 // pred_fallthru
      _
    %388 = vsyncpa [#allocation3], 1
    %389 = vsyncpa [#allocation6], 1
    %390 = vsyncpa [#allocation4], 1

</llo_original>
